<compile_context>
chip_gen: v7x
topology: tpu7x:2x2x1
jax: 0.10.0
libtpu: 0.0.40
codegen_flags: <defaults>
</compile_context>

<pallas_src>
import functools

import jax
import jax.numpy as jnp
from jax.experimental import pallas as pl
from jax.experimental.pallas import tpu as pltpu


def _cnn_kernel(wc_ref, bc_ref, x_ref, wdT_ref, bd_ref, o_ref):
    # wc_ref : SMEM (OC*Cin,) conv weights (scalars, c-major per out-channel)
    # bc_ref : SMEM (OC,)     conv bias (scalars)
    # x_ref  : VMEM (B, Cin, S) im2col patches (for 1x1/s1 conv: x.reshape)
    # wdT_ref: VMEM (OC*S, HW_out) dense weight, PRE-transposed on host
    # bd_ref : VMEM (1, HW_out)    dense bias
    # o_ref  : VMEM (B, HW_out)
    B, Cin, S = x_ref.shape
    OC = bc_ref.shape[0]

    # Conv2d + bias + sigmoid on the VPU, unrolled over (OC, Cin). Output is
    # produced directly in the PyTorch flatten order flat[b, o*S + s].
    acts = []
    for o in range(OC):
        acc = x_ref[:, 0, :] * wc_ref[o * Cin + 0] + bc_ref[o]      # (B, S) f32
        for c in range(1, Cin):
            acc = acc + x_ref[:, c, :] * wc_ref[o * Cin + c]
        acts.append(jax.nn.sigmoid(acc))                            # EUP, f32
    flat = acts[0] if OC == 1 else jnp.concatenate(acts, axis=-1)   # (B, OC*S)

    # Linear: contract flat's lane dim with wdT's sublane dim (no XLU
    # transpose needed since wd was transposed on the host). Cast the small
    # activation to the weight dtype (bf16 path on v6e/v7x); accumulate f32.
    out = jnp.dot(flat.astype(wdT_ref.dtype), wdT_ref[...],
                  preferred_element_type=jnp.float32)               # (B, HW_out)
    o_ref[...] = out + bd_ref[...]


def _im2col_nchw(x, k, stride):
    """(B, C, H, W) -> (B, C*k*k, Hn*Wn); flattening order matches PyTorch
    Conv2d weight.reshape(OC, C*k*k) (c-major, then kh, then kw)."""
    B, C, H, W = x.shape
    Hn = (H - k) // stride + 1
    Wn = (W - k) // stride + 1
    cols = []
    for di in range(k):
        for dj in range(k):
            cols.append(x[:, :, di:di + stride * Hn:stride, dj:dj + stride * Wn:stride])
    patches = jnp.stack(cols, axis=2)                                # (B, C, k*k, Hn, Wn)
    return patches.reshape(B, C * k * k, Hn * Wn), Hn, Wn


@functools.partial(jax.jit, static_argnames=("kernel_size", "stride", "wd_dtype"))
def cnn_forward(x, wc, bc, wd, bd, *, kernel_size=1, stride=1,
                wd_dtype=jnp.float32):
    """Pallas implementation of CNN.forward.

    x  : (B, C, H, W)  float32 (NCHW, same as PyTorch)
    wc : (OC, C, k, k) conv weight ; bc : (OC,) conv bias
    wd : (H*W, OC*Hn*Wn) linear weight ; bd : (H*W,) linear bias
    wd_dtype: dtype used for the dense weight inside the MXU matmul
              (jnp.bfloat16 recommended on v6e/v7x at larger sizes).
    returns: (B, H*W) float32
    """
    B, C, H, W = x.shape
    OC = wc.shape[0]
    k, s = kernel_size, stride
    Hn = (H - k) // s + 1
    Wn = (W - k) // s + 1
    S = Hn * Wn
    Cin = C * k * k
    HW_out = H * W

    if k == 1 and s == 1:
        # 1x1 / stride-1 conv: im2col is the identity, just a free reshape.
        patches = x.reshape(B, C, S)
    else:
        patches, _, _ = _im2col_nchw(x, k, s)
    patches = patches.astype(jnp.float32)                 # (B, Cin, S)

    wc_flat = wc.reshape(OC * Cin).astype(jnp.float32)    # SMEM scalars
    bc_flat = bc.reshape(OC).astype(jnp.float32)          # SMEM scalars
    # One-time host transpose so the kernel contracts wd's sublane dim.
    wdT = wd.T.astype(wd_dtype)                           # (OC*S, HW_out)
    bd2 = bd.reshape(1, HW_out).astype(jnp.float32)

    cost = pl.CostEstimate(
        flops=2 * B * OC * Cin * S + 2 * B * (OC * S) * HW_out,
        transcendentals=B * OC * S,
        bytes_accessed=(patches.size * 4
                        + wdT.size * jnp.dtype(wd_dtype).itemsize
                        + bd2.size * 4 + (OC * Cin + OC) * 4
                        + B * HW_out * 4),
    )

    out = pl.pallas_call(
        _cnn_kernel,
        out_shape=jax.ShapeDtypeStruct((B, HW_out), jnp.float32),
        # No grid: single invocation, every operand resident exactly once.
        in_specs=[
            pl.BlockSpec(memory_space=pltpu.MemorySpace.SMEM),   # wc scalars
            pl.BlockSpec(memory_space=pltpu.MemorySpace.SMEM),   # bc scalars
            pl.BlockSpec(memory_space=pltpu.MemorySpace.VMEM),   # patches
            pl.BlockSpec(memory_space=pltpu.MemorySpace.VMEM),   # wdT
            pl.BlockSpec(memory_space=pltpu.MemorySpace.VMEM),   # bd
        ],
        out_specs=pl.BlockSpec(memory_space=pltpu.MemorySpace.VMEM),
        cost_estimate=cost,
    )(wc_flat, bc_flat, patches, wdT, bd2)
    return out


def _reference_forward(x, wc, bc, wd, bd, kernel_size=1, stride=1):
    """Pure-JAX reference mirroring the PyTorch module."""
    patches, Hn, Wn = _im2col_nchw(x, kernel_size, stride)
    OC = wc.shape[0]
    conv = jnp.einsum("oc,bcs->bos", wc.reshape(OC, -1), patches) + bc.reshape(1, OC, 1)
    act = jax.nn.sigmoid(conv)
    flat = act.reshape(x.shape[0], -1)
    return flat @ wd.T + bd


if __name__ == "__main__":
    # Small shapes consistent with the module: B=2, in_channel=4, Height=Width=16,
    # out_channel=1, kernel_size=1, stride=1 (module defaults).
    B, C, H, W = 2, 4, 16, 16
    OC, K, STRIDE = 1, 1, 1
    Hn = (H - K) // STRIDE + 1
    Wn = (W - K) // STRIDE + 1

    key = jax.random.PRNGKey(0)
    kx, kwc, kbc, kwd, kbd = jax.random.split(key, 5)

    x = jax.random.normal(kx, (B, C, H, W), dtype=jnp.float32)
    wc = 0.1 * jax.random.normal(kwc, (OC, C, K, K), dtype=jnp.float32)
    bc = 0.1 * jax.random.normal(kbc, (OC,), dtype=jnp.float32)
    wd = 0.05 * jax.random.normal(kwd, (H * W, OC * Hn * Wn), dtype=jnp.float32)
    bd = 0.05 * jax.random.normal(kbd, (H * W,), dtype=jnp.float32)

    ref = _reference_forward(x, wc, bc, wd, bd, kernel_size=K, stride=STRIDE)

    # f32 dense-weight path (bitwise-faithful to the PyTorch module numerics).
    out = cnn_forward(x, wc, bc, wd, bd, kernel_size=K, stride=STRIDE)
    out = jax.block_until_ready(out)
    assert out.shape == (B, H * W), out.shape
    assert jnp.allclose(out, ref, atol=1e-5, rtol=1e-5), \
        float(jnp.max(jnp.abs(out - ref)))

    # bf16 dense-weight path (v6e/v7x suggestion): looser tolerance expected.
    out_bf16 = cnn_forward(x, wc, bc, wd, bd, kernel_size=K, stride=STRIDE,
                           wd_dtype=jnp.bfloat16)
    out_bf16 = jax.block_until_ready(out_bf16)
    assert jnp.allclose(out_bf16, ref, atol=5e-2, rtol=5e-2), \
        float(jnp.max(jnp.abs(out_bf16 - ref)))

    print("KERNEL_OK")
</pallas_src>

<mosaic_0001>
module attributes {stable_mosaic.version = 11 : i64} {
  func.func @_cnn_kernel(%arg0: memref<4xf32, #tpu.memory_space<smem>>, %arg1: memref<1xf32, #tpu.memory_space<smem>>, %arg2: memref<2x4x256xf32, #tpu.memory_space<vmem>>, %arg3: memref<256x256xf32, #tpu.memory_space<vmem>>, %arg4: memref<1x256xf32, #tpu.memory_space<vmem>>, %arg5: memref<2x256xf32, #tpu.memory_space<vmem>>) attributes {dimension_semantics = [], scalar_prefetch = 0 : i64, scratch_operands = 0 : i64, tpu.core_type = #tpu.core_type<tc>} {
    %c0 = arith.constant 0 : index
    %c0_0 = arith.constant 0 : index
    %c0_1 = arith.constant 0 : index
    %0 = vector.load %arg2[%c0, %c0_0, %c0_1] : memref<2x4x256xf32, #tpu.memory_space<vmem>>, vector<2x1x256xf32>
    %1 = vector.shape_cast %0 : vector<2x1x256xf32> to vector<2x256xf32>
    %c0_2 = arith.constant 0 : index
    %2 = memref.load %arg0[%c0_2] : memref<4xf32, #tpu.memory_space<smem>>
    %3 = vector.broadcast %2 : f32 to vector<2x256xf32>
    %4 = arith.mulf %1, %3 : vector<2x256xf32>
    %c0_3 = arith.constant 0 : index
    %5 = memref.load %arg1[%c0_3] : memref<1xf32, #tpu.memory_space<smem>>
    %6 = vector.broadcast %5 : f32 to vector<2x256xf32>
    %7 = arith.addf %4, %6 : vector<2x256xf32>
    %c0_4 = arith.constant 0 : index
    %c1 = arith.constant 1 : index
    %c0_5 = arith.constant 0 : index
    %8 = vector.load %arg2[%c0_4, %c1, %c0_5] : memref<2x4x256xf32, #tpu.memory_space<vmem>>, vector<2x1x256xf32>
    %9 = vector.shape_cast %8 : vector<2x1x256xf32> to vector<2x256xf32>
    %c1_6 = arith.constant 1 : index
    %10 = memref.load %arg0[%c1_6] : memref<4xf32, #tpu.memory_space<smem>>
    %11 = vector.broadcast %10 : f32 to vector<2x256xf32>
    %12 = arith.mulf %9, %11 : vector<2x256xf32>
    %13 = arith.addf %7, %12 : vector<2x256xf32>
    %c0_7 = arith.constant 0 : index
    %c2 = arith.constant 2 : index
    %c0_8 = arith.constant 0 : index
    %14 = vector.load %arg2[%c0_7, %c2, %c0_8] : memref<2x4x256xf32, #tpu.memory_space<vmem>>, vector<2x1x256xf32>
    %15 = vector.shape_cast %14 : vector<2x1x256xf32> to vector<2x256xf32>
    %c2_9 = arith.constant 2 : index
    %16 = memref.load %arg0[%c2_9] : memref<4xf32, #tpu.memory_space<smem>>
    %17 = vector.broadcast %16 : f32 to vector<2x256xf32>
    %18 = arith.mulf %15, %17 : vector<2x256xf32>
    %19 = arith.addf %13, %18 : vector<2x256xf32>
    %c0_10 = arith.constant 0 : index
    %c3 = arith.constant 3 : index
    %c0_11 = arith.constant 0 : index
    %20 = vector.load %arg2[%c0_10, %c3, %c0_11] : memref<2x4x256xf32, #tpu.memory_space<vmem>>, vector<2x1x256xf32>
    %21 = vector.shape_cast %20 : vector<2x1x256xf32> to vector<2x256xf32>
    %c3_12 = arith.constant 3 : index
    %22 = memref.load %arg0[%c3_12] : memref<4xf32, #tpu.memory_space<smem>>
    %23 = vector.broadcast %22 : f32 to vector<2x256xf32>
    %24 = arith.mulf %21, %23 : vector<2x256xf32>
    %25 = arith.addf %19, %24 : vector<2x256xf32>
    %26 = arith.negf %25 : vector<2x256xf32>
    %27 = math.exp %26 : vector<2x256xf32>
    %cst = arith.constant 1.000000e+00 : f32
    %28 = vector.broadcast %cst : f32 to vector<2x256xf32>
    %29 = arith.addf %28, %27 : vector<2x256xf32>
    %30 = arith.divf %28, %29 : vector<2x256xf32>
    %c0_13 = arith.constant 0 : index
    %c0_14 = arith.constant 0 : index
    %31 = vector.load %arg3[%c0_13, %c0_14] : memref<256x256xf32, #tpu.memory_space<vmem>>, vector<256x256xf32>
    %cst_15 = arith.constant dense<0.000000e+00> : vector<2x256xf32>
    %32 = tpu.matmul %30, %31, %cst_15 {dimension_numbers = #tpu.dot_dimension_numbers<[1], [0], [0], [1], [0, 0, 1, 1], [], []>} : vector<2x256xf32>, vector<256x256xf32>, vector<2x256xf32> -> vector<2x256xf32>
    %c0_16 = arith.constant 0 : index
    %c0_17 = arith.constant 0 : index
    %33 = vector.load %arg4[%c0_16, %c0_17] : memref<1x256xf32, #tpu.memory_space<vmem>>, vector<1x256xf32>
    %34 = vector.broadcast %33 : vector<1x256xf32> to vector<2x256xf32>
    %35 = arith.addf %32, %34 : vector<2x256xf32>
    %c0_18 = arith.constant 0 : index
    %c0_19 = arith.constant 0 : index
    %36 = vector.load %arg5[%c0_18, %c0_19] : memref<2x256xf32, #tpu.memory_space<vmem>>, vector<2x256xf32>
    tpu.vector_store %arg5[%c0_18, %c0_19], %35 {strides = array<i32>} : memref<2x256xf32, #tpu.memory_space<vmem>>, vector<2x256xf32>,
    return
  }
}

</mosaic_0001>

<llo_original>
// kernel: cnn_forward.1
$region0: #{cnn_forward.1}
  #allocation0 [shape = 'u32[]', space=smem, size = 0x4, offset = 0x4, fixed_abs, tag = 'smem constant byte address 0x4 - core index']
  #allocation1 [shape = 'u32[144,128]{1,0:T(1,128)}', space=vmem, size = 0x12000, scoped, tag = 'internal scratch']
  #allocation2 [shape = 'f32[1]{0:T(128)S(6)}', space=smem, size = 0x200, scoped, tag = 'scoped memory for cnn_forward.1']
  %s0 = inlined_call_operand.vmem [shape: f32[4], index: 0, kind: input, shape index: {}]
  %s1 = inlined_call_operand.<no memory space> [shape: f32[1], index: 1, kind: input, shape index: {}]
  %s2 = inlined_call_operand.vmem [shape: f32[2,4,256], index: 2, kind: input, shape index: {}]
  %s3 = inlined_call_operand.vmem [shape: f32[256,256], index: 3, kind: input, shape index: {}]
  %s4 = inlined_call_operand.vmem [shape: f32[1,256], index: 4, kind: input, shape index: {}]
  %s5 = inlined_call_operand.hbm [shape: f32[2,256], index: 5, kind: output, shape index: {}]
  %s6 = sld [smem:[#allocation0]]
  $region34: #{cnn_forward.1} parent=0
    _
  %s8 = ssub.s32 1, %s6
  %s9 = scalar_select 0, %s8, %s6
  %10 = sst [smem:[#allocation2]] %s1
  $region1: #{cnn_forward.1} parent=0
    #allocation3 [shape = 'u8[512]{0}', space=smem, size = 0x200, scoped, tag = 'input window, operand 0, single buffered']
    #allocation4 [shape = 's32[1]{0}', space=sflag, size = 0x4, scoped, tag = 'scoped memory for cnn_forward.1']
    #allocation5 [shape = 's32[1]{0}', space=sflag, size = 0x4, scoped, tag = 'scoped memory for cnn_forward.1']
    #allocation6 [shape = 'u8[2048]{0}', space=vmem, size = 0x800, scoped, tag = 'output window, operand 0, single buffered']
    %11 = vsyncpa [#allocation5], 0
    %12 = vsyncpa [#allocation4], 0
    // Predicated region
    $region2: #{cnn_forward.1} parent=1 // pred_check
      _
    $region3: #{cnn_forward.1} parent=1 // pred_check_branch
      %14 = sbr.rel (0) target = $region5
    $region4: #{cnn_forward.1} parent=1 // pred_region
      %s16 = ssub.s32 16, 16
      %17 = vsyncadd [#allocation5], %s16
      %s19 = sshll.u32 %s0, 4
      %s20 = int_to_ptr.vmem [resolvable:$true] %s19
      %22 = dma.vmem_to_smem %s20, 16, [#allocation3], [#allocation5]
    $region5: #{cnn_forward.1} parent=1 // pred_fallthru
      _
    // Predicated region
    $region6: #{cnn_forward.1} parent=1 // pred_check
      _
    $region7: #{cnn_forward.1} parent=1 // pred_check_branch
      %24 = sbr.rel (0) target = $region9
    $region8: #{cnn_forward.1} parent=1 // pred_region
      _
    $region9: #{cnn_forward.1} parent=1 // pred_fallthru
      _
    // Predicated region
    $region10: #{cnn_forward.1} parent=1 // pred_check
      _
    $region11: #{cnn_forward.1} parent=1 // pred_check_branch
      %26 = sbr.rel (0) target = $region13
    $region12: #{cnn_forward.1} parent=1 // pred_region
      _
    $region13: #{cnn_forward.1} parent=1 // pred_fallthru
      _
    // Predicated region
    $region14: #{cnn_forward.1} parent=1 // pred_check
      _
    $region15: #{cnn_forward.1} parent=1 // pred_check_branch
      %28 = sbr.rel (0) target = $region17
    $region16: #{cnn_forward.1} parent=1 // pred_region
      _
    $region17: #{cnn_forward.1} parent=1 // pred_fallthru
      _
    // Predicated region
    $region18: #{cnn_forward.1} parent=1 // pred_check
      _
    $region19: #{cnn_forward.1} parent=1 // pred_check_branch
      %30 = sbr.rel (0) target = $region21
    $region20: #{cnn_forward.1} parent=1 // pred_region
      _
    $region21: #{cnn_forward.1} parent=1 // pred_fallthru
      _
    // Predicated region
    $region22: #{cnn_forward.1} parent=1 // pred_check
      _
    $region23: #{cnn_forward.1} parent=1 // pred_check_branch
      %32 = sbr.rel (0) target = $region25
    $region24: #{cnn_forward.1} parent=1 // pred_region
      %33 = dma.done [#allocation5], 16
    $region25: #{cnn_forward.1} parent=1 // pred_fallthru
      _
    %34 = sfence
    %v35 = vld [vmem:[%s2] ss:$4 sm:$0x3]
    %s36 = scalar_lea.vmem %s2, 8
    %v37 = vld [vmem:[%s36] ss:$4 sm:$0x3]
    %s38 = sld [smem:[#allocation3]]
    %v39 = vstv %s38
    %v40 = vmul.f32 %v35, %v39
    %v41 = vmul.f32 %v37, %v39
    %s42 = sld [smem:[#allocation2]]
    %v43 = vstv %s42
    %v44 = vadd.f32 %v40, %v43
    %v45 = vadd.f32 %v41, %v43
    %s46 = scalar_lea.vmem %s2, 1
    %v47 = vld [vmem:[%s46] ss:$4 sm:$0x3]
    %s48 = scalar_lea.vmem %s2, 9
    %v49 = vld [vmem:[%s48] ss:$4 sm:$0x3]
    %s50 = sld [smem:[#allocation3 + $0x1]]
    %v51 = vstv %s50
    %v52 = vmul.f32 %v47, %v51
    %v53 = vmul.f32 %v49, %v51
    %v54 = vadd.f32 %v44, %v52
    %v55 = vadd.f32 %v45, %v53
    %s56 = scalar_lea.vmem %s2, 2
    %v57 = vld [vmem:[%s56] ss:$4 sm:$0x3]
    %s58 = scalar_lea.vmem %s2, 10
    %v59 = vld [vmem:[%s58] ss:$4 sm:$0x3]
    %s60 = sld [smem:[#allocation3 + $0x2]]
    %v61 = vstv %s60
    %v62 = vmul.f32 %v57, %v61
    %v63 = vmul.f32 %v59, %v61
    %v64 = vadd.f32 %v54, %v62
    %v65 = vadd.f32 %v55, %v63
    %s66 = scalar_lea.vmem %s2, 3
    %v67 = vld [vmem:[%s66] ss:$4 sm:$0x3]
    %s68 = scalar_lea.vmem %s2, 11
    %v69 = vld [vmem:[%s68] ss:$4 sm:$0x3]
    %s70 = sld [smem:[#allocation3 + $0x3]]
    %v71 = vstv %s70
    %v72 = vmul.f32 %v67, %v71
    %v73 = vmul.f32 %v69, %v71
    %v74 = vadd.f32 %v64, %v72
    %v75 = vadd.f32 %v65, %v73
    %v76 = vxor.u32 %v74, 2147483648
    %v77 = vxor.u32 %v75, 2147483648
    %v78 = vmul.f32 %v76, 1.442695
    %v79 = vpow.pop %v78
    %v80 = vmul.f32 %v77, 1.442695
    %v81 = vpow.pop %v80
    %v82 = vadd.f32 %v79, 1.0
    %v83 = vadd.f32 %v81, 1.0
    %v84 = vrcp.pop %v82
    %v85 = vmul.f32 1.0, %v84
    %v86 = vrcp.pop %v83
    %v87 = vmul.f32 1.0, %v86
    %v88 = vld [vmem:[%s3] sm:$0xff]
    %v89 = vld [vmem:[%s3 + $0x8] sm:$0xff]
    %v90 = vld [vmem:[%s3 + $0x10] sm:$0xff]
    %v91 = vld [vmem:[%s3 + $0x18] sm:$0xff]
    %v92 = vld [vmem:[%s3 + $0x20] sm:$0xff]
    %v93 = vld [vmem:[%s3 + $0x28] sm:$0xff]
    %v94 = vld [vmem:[%s3 + $0x30] sm:$0xff]
    %v95 = vld [vmem:[%s3 + $0x38] sm:$0xff]
    %v96 = vld [vmem:[%s3 + $0x40] sm:$0xff]
    %v97 = vld [vmem:[%s3 + $0x48] sm:$0xff]
    %v98 = vld [vmem:[%s3 + $0x50] sm:$0xff]
    %v99 = vld [vmem:[%s3 + $0x58] sm:$0xff]
    %v100 = vld [vmem:[%s3 + $0x60] sm:$0xff]
    %v101 = vld [vmem:[%s3 + $0x68] sm:$0xff]
    %v102 = vld [vmem:[%s3 + $0x70] sm:$0xff]
    %v103 = vld [vmem:[%s3 + $0x78] sm:$0xff]
    %v104 = vld [vmem:[%s3 + $0x80] sm:$0xff]
    %v105 = vld [vmem:[%s3 + $0x88] sm:$0xff]
    %v106 = vld [vmem:[%s3 + $0x90] sm:$0xff]
    %v107 = vld [vmem:[%s3 + $0x98] sm:$0xff]
    %v108 = vld [vmem:[%s3 + $0xa0] sm:$0xff]
    %v109 = vld [vmem:[%s3 + $0xa8] sm:$0xff]
    %v110 = vld [vmem:[%s3 + $0xb0] sm:$0xff]
    %v111 = vld [vmem:[%s3 + $0xb8] sm:$0xff]
    %v112 = vld [vmem:[%s3 + $0xc0] sm:$0xff]
    %v113 = vld [vmem:[%s3 + $0xc8] sm:$0xff]
    %v114 = vld [vmem:[%s3 + $0xd0] sm:$0xff]
    %v115 = vld [vmem:[%s3 + $0xd8] sm:$0xff]
    %v116 = vld [vmem:[%s3 + $0xe0] sm:$0xff]
    %v117 = vld [vmem:[%s3 + $0xe8] sm:$0xff]
    %v118 = vld [vmem:[%s3 + $0xf0] sm:$0xff]
    %v119 = vld [vmem:[%s3 + $0xf8] sm:$0xff]
    %v120 = vld [vmem:[%s3 + $0x100] sm:$0xff]
    %v121 = vld [vmem:[%s3 + $0x108] sm:$0xff]
    %v122 = vld [vmem:[%s3 + $0x110] sm:$0xff]
    %v123 = vld [vmem:[%s3 + $0x118] sm:$0xff]
    %v124 = vld [vmem:[%s3 + $0x120] sm:$0xff]
    %v125 = vld [vmem:[%s3 + $0x128] sm:$0xff]
    %v126 = vld [vmem:[%s3 + $0x130] sm:$0xff]
    %v127 = vld [vmem:[%s3 + $0x138] sm:$0xff]
    %v128 = vld [vmem:[%s3 + $0x140] sm:$0xff]
    %v129 = vld [vmem:[%s3 + $0x148] sm:$0xff]
    %v130 = vld [vmem:[%s3 + $0x150] sm:$0xff]
    %v131 = vld [vmem:[%s3 + $0x158] sm:$0xff]
    %v132 = vld [vmem:[%s3 + $0x160] sm:$0xff]
    %v133 = vld [vmem:[%s3 + $0x168] sm:$0xff]
    %v134 = vld [vmem:[%s3 + $0x170] sm:$0xff]
    %v135 = vld [vmem:[%s3 + $0x178] sm:$0xff]
    %v136 = vld [vmem:[%s3 + $0x180] sm:$0xff]
    %v137 = vld [vmem:[%s3 + $0x188] sm:$0xff]
    %v138 = vld [vmem:[%s3 + $0x190] sm:$0xff]
    %v139 = vld [vmem:[%s3 + $0x198] sm:$0xff]
    %v140 = vld [vmem:[%s3 + $0x1a0] sm:$0xff]
    %v141 = vld [vmem:[%s3 + $0x1a8] sm:$0xff]
    %v142 = vld [vmem:[%s3 + $0x1b0] sm:$0xff]
    %v143 = vld [vmem:[%s3 + $0x1b8] sm:$0xff]
    %v144 = vld [vmem:[%s3 + $0x1c0] sm:$0xff]
    %v145 = vld [vmem:[%s3 + $0x1c8] sm:$0xff]
    %v146 = vld [vmem:[%s3 + $0x1d0] sm:$0xff]
    %v147 = vld [vmem:[%s3 + $0x1d8] sm:$0xff]
    %v148 = vld [vmem:[%s3 + $0x1e0] sm:$0xff]
    %v149 = vld [vmem:[%s3 + $0x1e8] sm:$0xff]
    %v150 = vld [vmem:[%s3 + $0x1f0] sm:$0xff]
    %v151 = vld [vmem:[%s3 + $0x1f8] sm:$0xff]
    %v152 = vld [vmem:[%s4] sm:$0x3]
    %v154 = vlaneseq
    %v155 = vshrl.u32 %v154, 7
    %v156 = vsub.s32 0, %v155
    %v157 = vrot.slane %v152, %v156
    %v158 = vlaneseq
    %v159 = vshrl.u32 %v158, 7
    %v160 = vsub.s32 1, %v159
    %v161 = vrot.slane %v152, %v160
    %v166 = vcombine.low %v85, %v87
    %v168 = vunpack.c.l.s4 1966171168
    %v169 = vunpack.c.0.s8 %v168
    %v170 = vlaneseq
    %v171 = vshrl.u32 %v170, 7
    %v172 = vsub.s32 %v169, %v171
    %v173 = vrot.slane %v166, %v172
    %v174 = vcombine.high %v173, %v173
    %v176 = vunpack.c.l.s4 1966171168
    %v177 = vunpack.c.0.s8 %v176
    %v178 = vlaneseq
    %v179 = vshrl.u32 %v178, 7
    %v180 = vsub.s32 %v177, %v179
    %v181 = vrot.slane %v173, %v180
    %v183 = vunpack.c.l.s4 1966171168
    %v184 = vunpack.c.0.s8 %v183
    %v185 = vlaneseq
    %v186 = vshrl.u32 %v185, 7
    %v187 = vsub.s32 %v184, %v186
    %v188 = vrot.slane %v174, %v187
    %191 = vmatprep.subr.mxu0 %v89
    %192 = vmatpush1.msra.mxu0 %v88
    %193 = vmatprep.subr.mxu0 %v91
    %194 = vmatpush1.msra.mxu0 %v90
    %195 = vmatprep.subr.mxu0 %v93
    %196 = vmatpush1.msra.mxu0 %v92
    %197 = vmatprep.subr.mxu0 %v95
    %198 = vmatpush1.msra.mxu0 %v94
    %199 = vmatprep.subr.mxu0 %v97
    %200 = vmatpush1.msra.mxu0 %v96
    %201 = vmatprep.subr.mxu0 %v99
    %202 = vmatpush1.msra.mxu0 %v98
    %203 = vmatprep.subr.mxu0 %v101
    %204 = vmatpush1.msra.mxu0 %v100
    %205 = vmatprep.subr.mxu0 %v103
    %206 = vmatpush1.msra.mxu0 %v102
    %207 = vmatprep.subr.mxu0 %v105
    %208 = vmatpush1.msra.mxu0 %v104
    %209 = vmatprep.subr.mxu0 %v107
    %210 = vmatpush1.msra.mxu0 %v106
    %211 = vmatprep.subr.mxu0 %v109
    %212 = vmatpush1.msra.mxu0 %v108
    %213 = vmatprep.subr.mxu0 %v111
    %214 = vmatpush1.msra.mxu0 %v110
    %215 = vmatprep.subr.mxu0 %v113
    %216 = vmatpush1.msra.mxu0 %v112
    %217 = vmatprep.subr.mxu0 %v115
    %218 = vmatpush1.msra.mxu0 %v114
    %219 = vmatprep.subr.mxu0 %v117
    %220 = vmatpush1.msra.mxu0 %v116
    %221 = vmatprep.subr.mxu0 %v119
    %222 = vmatpush1.msra.mxu0 %v118
    %223 = vmatprep.subr.mxu0 %v121
    %224 = vmatpush1.msra.mxu0 %v120
    %225 = vmatprep.subr.mxu0 %v123
    %226 = vmatpush1.msra.mxu0 %v122
    %227 = vmatprep.subr.mxu0 %v125
    %228 = vmatpush1.msra.mxu0 %v124
    %229 = vmatprep.subr.mxu0 %v127
    %230 = vmatpush1.msra.mxu0 %v126
    %231 = vmatprep.subr.mxu0 %v129
    %232 = vmatpush1.msra.mxu0 %v128
    %233 = vmatprep.subr.mxu0 %v131
    %234 = vmatpush1.msra.mxu0 %v130
    %235 = vmatprep.subr.mxu0 %v133
    %236 = vmatpush1.msra.mxu0 %v132
    %237 = vmatprep.subr.mxu0 %v135
    %238 = vmatpush1.msra.mxu0 %v134
    %239 = vmatprep.subr.mxu0 %v137
    %240 = vmatpush1.msra.mxu0 %v136
    %241 = vmatprep.subr.mxu0 %v139
    %242 = vmatpush1.msra.mxu0 %v138
    %243 = vmatprep.subr.mxu0 %v141
    %244 = vmatpush1.msra.mxu0 %v140
    %245 = vmatprep.subr.mxu0 %v143
    %246 = vmatpush1.msra.mxu0 %v142
    %247 = vmatprep.subr.mxu0 %v145
    %248 = vmatpush1.msra.mxu0 %v144
    %249 = vmatprep.subr.mxu0 %v147
    %250 = vmatpush1.msra.mxu0 %v146
    %251 = vmatprep.subr.mxu0 %v149
    %252 = vmatpush1.msra.mxu0 %v148
    %253 = vmatprep.subr.mxu0 %v151
    %254 = vmatpush1.msra.mxu0 %v150
    %255 = vmatprep.mubr.f32.mxu0 %v188
    %256 = vmatmul.mubr.f32.gmra.mrb[0].mxu0 %v181
    %v257 = vpop.f32.mrb[0].mxu0
    %v258 = vadd.f32 %v157, %v257
    %v259 = vpop.f32.mrb[0].mxu0
    %v260 = vadd.f32 %v161, %v259
    %261 = vdwg.mxu0
    %v264 = vcombine.low %v258, %v260
    %v266 = vunpack.c.l.s4 1983009808
    %v267 = vunpack.c.0.s8 %v266
    %v268 = vlaneseq
    %v269 = vshrl.u32 %v268, 7
    %v270 = vsub.s32 %v267, %v269
    %v271 = vrot.slane %v264, %v270
    %273 = vst [vmem:[#allocation6] sm:$0xf] %v271
    // Predicated region
    $region26: #{cnn_forward.1} parent=1 // pred_check
      _
    $region27: #{cnn_forward.1} parent=1 // pred_check_branch
      %275 = sbr.rel (0) target = $region29
    $region28: #{cnn_forward.1} parent=1 // pred_region
      %s277 = ssub.s32 64, 64
      %278 = vsyncadd [#allocation4], %s277
      %s280 = sshll.u32 [#allocation6], 4
      %s281 = int_to_ptr.vmem [resolvable:$true] %s280
      %283 = dma.vmem_to_hbm [thread:$0]  %s281, 64, %s5, [#allocation4]
    $region29: #{cnn_forward.1} parent=1 // pred_fallthru
      _
    // Predicated region
    $region30: #{cnn_forward.1} parent=1 // pred_check
      _
    $region31: #{cnn_forward.1} parent=1 // pred_check_branch
      %285 = sbr.rel (0) target = $region33
    $region32: #{cnn_forward.1} parent=1 // pred_region
      %286 = dma.done [#allocation4], 64
    $region33: #{cnn_forward.1} parent=1 // pred_fallthru
      _
    %287 = vsyncpa [#allocation4], 1
    %288 = vsyncpa [#allocation5], 1

</llo_original>
